<compile_context>
chip_gen: v5e
topology: v5e:2x2
jax: 0.10.0
libtpu: 0.0.40
codegen_flags: <defaults>
</compile_context>

<pallas_src>
import math

import jax
import jax.numpy as jnp
from jax.experimental import pallas as pl
from jax.experimental.pallas import tpu as pltpu


# ------------------------------- kernel -------------------------------------

def _rule_transform_kernel(x_ref, w_ref, b_ref, prior_ref, action_ref, masked_ref):
    """Fused per-tile: action = x @ W_blockdiag + b ; masked = action + priors.

    Per grid step (i = batch tile, j = node tile):
      x_ref:      (TB, Ng*H)   lane-dense activations for node tile j
      w_ref:      (Ng*H, Ng*R) resident block-diagonal weight (same for all j)
      b_ref:      (1,  Ng*R)   resident tiled bias
      prior_ref:  (TB, Ng*R)
      action_ref: (TB, Ng*R)
      masked_ref: (TB, Ng*R)
    """
    act = jnp.dot(x_ref[...], w_ref[...], preferred_element_type=jnp.float32)
    act = act + b_ref[...].astype(jnp.float32)
    action_ref[...] = act.astype(action_ref.dtype)
    masked_ref[...] = (act + prior_ref[...].astype(jnp.float32)
                       ).astype(masked_ref.dtype)


# --------------------------- tiling heuristics -------------------------------

def _round_up(x, m):
    return ((x + m - 1) // m) * m


def _pick_node_tile(n, r, h, itemsize, weight_cap_bytes=8 * 1024 * 1024):
    """Node-tile size Ng with Ng*R a multiple of 128 (lane-dense outputs).

    Prefers Ng*R == 256 (fills the 256-wide MXU on v6e/v7x; two clean passes
    on v5e's 128-wide MXU), never pads N more than necessary, and keeps the
    resident block-diagonal weight (Ng*H x Ng*R, scales as Ng^2) under
    `weight_cap_bytes`.
    """
    base = 128 // math.gcd(r, 128)           # smallest Ng with (Ng*R) % 128 == 0
    n_pad_min = _round_up(n, base)
    ng = base
    while (2 * ng) * r <= 256 and (2 * ng) <= n_pad_min:
        ng *= 2
    while ng > base and (ng * h) * (ng * r) * itemsize > weight_cap_bytes:
        ng //= 2
    # TODO(synk): for very large hidden sizes even Ng=base can exceed the cap;
    # that case needs an extra reduction grid axis over H (not needed here).
    return ng


def _pick_batch_tile(batch, ngh, ngr, itemsize, fixed_vmem_bytes,
                     tile_budget_bytes=24 * 1024 * 1024):
    """Rows per grid step from a VMEM budget.

    Budget covers the double-buffered pipelined tiles (x + priors + 2 outputs)
    plus the resident weight/bias footprint (`fixed_vmem_bytes`).  The chosen
    budget is safe on v7x's 64 MiB VMEM and large enough to sit near the HBM
    roofline on v5e/v6e (128 MiB VMEM).
    """
    sublane = max(8, 32 // itemsize)                 # 8 f32, 16 bf16, 32 int8
    per_row = 2 * (ngh + 3 * ngr) * itemsize         # 2 pipeline buffers each
    avail = max(tile_budget_bytes - fixed_vmem_bytes, per_row * sublane)
    tb = avail // per_row
    # Keep >= 2 batch tiles when there is enough work so the "parallel" grid
    # axes can be sharded across v7x's two TensorCores (no-op on v5e/v6e).
    if batch >= 2 * sublane:
        tb = min(tb, _round_up(-(-batch // 2), sublane))
    if tb >= batch:
        return batch                                 # full-extent block (legal)
    return max(sublane, (tb // sublane) * sublane)


# ------------------------------ forward --------------------------------------

@jax.jit
def one_value_per_node_rule_transform(x, w, b, full_logit_priors):
    """
    x:                 (B, N, H)  float32  node features
    w:                 (H, R)     float32  synthetic inner-model weight
    b:                 (R,)       float32  synthetic inner-model bias
    full_logit_priors: (B, N, R)  float32  logit priors (0 / -1e9 mask)

    Returns a dict matching the PyTorch module's pre_out augmentation.
    """
    B, N, H = x.shape
    R = w.shape[1]
    itemsize = jnp.dtype(x.dtype).itemsize

    # ---- node / feature padding so every block is lane-dense ---------------
    Ng = _pick_node_tile(N, R, H, itemsize)
    n_pad = _round_up(N, Ng)
    # x-block lane dim is Ng*H_pad; make it a multiple of 128 (zero-padded H
    # rows of w contribute exactly zero to the dot product).
    h_req = 128 // math.gcd(Ng, 128)
    H_pad = _round_up(H, h_req)

    x_p, priors_p, w_p = x, full_logit_priors, w
    if H_pad != H:
        x_p = jnp.pad(x_p, ((0, 0), (0, 0), (0, H_pad - H)))
        w_p = jnp.pad(w_p, ((0, H_pad - H), (0, 0)))
    if n_pad != N:
        x_p = jnp.pad(x_p, ((0, 0), (0, n_pad - N), (0, 0)))
        priors_p = jnp.pad(priors_p, ((0, 0), (0, n_pad - N), (0, 0)))

    NgH, NgR = Ng * H_pad, Ng * R
    x2d = x_p.reshape(B, n_pad * H_pad)               # row-major == .view(B,-1)
    priors2d_p = priors_p.reshape(B, n_pad * R)

    # Small Ng-sized (NOT N-sized) block-diagonal weight: identical for every
    # node tile, so it is DMA'd once and stays resident in VMEM.
    w_blk = jnp.kron(jnp.eye(Ng, dtype=w_p.dtype), w_p)     # (Ng*H_pad, Ng*R)
    b_blk = jnp.tile(b, Ng).reshape(1, NgR).astype(jnp.float32)

    # ---- VMEM accounting, batch tile, compiler params ----------------------
    w_bytes = NgH * NgR * itemsize
    b_bytes = NgR * 4
    # Single-buffer the resident weight once double-buffering would cost real
    # VMEM; tiny weights keep the default pipeline (nothing worth saving).
    single_buffer_w = w_bytes >= (2 << 20)
    w_buffers = 1 if single_buffer_w else 2
    fixed_bytes = w_buffers * w_bytes + 2 * b_bytes

    TB = _pick_batch_tile(B, NgH, NgR, itemsize, fixed_bytes)
    grid = (pl.cdiv(B, TB), n_pad // Ng)

    vmem_needed = fixed_bytes + 2 * TB * (NgH + 3 * NgR) * itemsize
    vmem_limit = int(min(max(2 * vmem_needed, 32 << 20), 48 << 20))

    cost = pl.CostEstimate(
        flops=2 * B * (n_pad * R) * NgH,             # actual MXU flops (Ng-bounded inflation)
        transcendentals=0,
        bytes_accessed=itemsize * (B * n_pad * H_pad + 3 * B * n_pad * R
                                   + NgH * NgR) + b_bytes,
    )

    if single_buffer_w:
        w_spec = pl.BlockSpec((NgH, NgR), lambda i, j: (0, 0),
                              pipeline_mode=pl.Buffered(1))
    else:
        w_spec = pl.BlockSpec((NgH, NgR), lambda i, j: (0, 0))

    action2d_p, masked2d_p = pl.pallas_call(
        _rule_transform_kernel,
        out_shape=(
            jax.ShapeDtypeStruct((B, n_pad * R), x.dtype),
            jax.ShapeDtypeStruct((B, n_pad * R), x.dtype),
        ),
        grid=grid,
        in_specs=[
            pl.BlockSpec((TB, NgH), lambda i, j: (i, j)),
            w_spec,                                          # resident weight
            pl.BlockSpec((1, NgR), lambda i, j: (0, 0)),     # resident bias
            pl.BlockSpec((TB, NgR), lambda i, j: (i, j)),
        ],
        out_specs=(
            pl.BlockSpec((TB, NgR), lambda i, j: (i, j)),
            pl.BlockSpec((TB, NgR), lambda i, j: (i, j)),
        ),
        compiler_params=pltpu.CompilerParams(
            dimension_semantics=("parallel", "parallel"),
            vmem_limit_bytes=vmem_limit),
        cost_estimate=cost,
    )(x2d, w_blk, b_blk, priors2d_p)

    # Strip node padding (wrapper-side slice; kernel stores stay unmasked).
    if n_pad != N:
        action2d = action2d_p.reshape(B, n_pad, R)[:, :N, :].reshape(B, N * R)
        masked2d = masked2d_p.reshape(B, n_pad, R)[:, :N, :].reshape(B, N * R)
    else:
        action2d, masked2d = action2d_p, masked2d_p

    priors2d = full_logit_priors.reshape(B, N * R)
    return {
        "action": action2d.reshape(B, N, R),          # inner model output
        "action_p_logits": action2d,                  # .view(batch, -1)
        "masked_policy_logits": masked2d,
        "used_priors": priors2d,
    }


if __name__ == "__main__":
    # Small deterministic shapes: batch=2, num_nodes=8, hidden=32, num_rules=16
    B, N, H, R = 2, 8, 32, 16
    key = jax.random.PRNGKey(0)
    kx, kw, kb, kp = jax.random.split(key, 4)

    x = jax.random.normal(kx, (B, N, H), dtype=jnp.float32)
    w = jax.random.normal(kw, (H, R), dtype=jnp.float32) * 0.1
    b = jax.random.normal(kb, (R,), dtype=jnp.float32) * 0.1
    # priors: 0 where allowed, -1e9 where masked (numpy full_logit_priors style)
    mask = jax.random.bernoulli(kp, p=0.7, shape=(B, N, R))
    full_logit_priors = jnp.where(mask, 0.0, -1e9).astype(jnp.float32)

    out = one_value_per_node_rule_transform(x, w, b, full_logit_priors)
    jax.block_until_ready(out)

    # Pure-JAX reference check of the forward semantics.
    action_ref = jnp.einsum("bnh,hr->bnr", x, w) + b
    logits_ref = action_ref.reshape(B, -1)
    priors_ref = full_logit_priors.reshape(B, -1)
    masked_ref = logits_ref + priors_ref

    assert jnp.allclose(out["action"], action_ref, atol=1e-4, rtol=1e-4)
    assert jnp.allclose(out["action_p_logits"], logits_ref, atol=1e-4, rtol=1e-4)
    assert jnp.allclose(out["masked_policy_logits"], masked_ref, atol=1e-4, rtol=1e-4)
    assert jnp.allclose(out["used_priors"], priors_ref)

    print("KERNEL_OK")
</pallas_src>

<mosaic_0001>
module attributes {stable_mosaic.version = 11 : i64} {
  func.func @_rule_transform_kernel(%arg0: i32, %arg1: i32, %arg2: memref<2x256xf32, #tpu.memory_space<vmem>>, %arg3: memref<256x128xf32, #tpu.memory_space<vmem>>, %arg4: memref<1x128xf32, #tpu.memory_space<vmem>>, %arg5: memref<2x128xf32, #tpu.memory_space<vmem>>, %arg6: memref<2x128xf32, #tpu.memory_space<vmem>>, %arg7: memref<2x128xf32, #tpu.memory_space<vmem>>) attributes {dimension_semantics = [#tpu.dimension_semantics<parallel>, #tpu.dimension_semantics<parallel>], iteration_bounds = array<i64: 1, 1>, scalar_prefetch = 0 : i64, scratch_operands = 0 : i64, tpu.core_type = #tpu.core_type<tc>, window_params = [{transform_indices = @transform_0, window_bounds = array<i64: 2, 256>}, {pipeline_mode = #tpu.pipeline_mode<synchronous>, transform_indices = @transform_1, window_bounds = array<i64: 256, 128>}, {pipeline_mode = #tpu.pipeline_mode<synchronous>, transform_indices = @transform_2, window_bounds = array<i64: 1, 128>}, {transform_indices = @transform_3, window_bounds = array<i64: 2, 128>}, {transform_indices = @transform_4, window_bounds = array<i64: 2, 128>}, {transform_indices = @transform_5, window_bounds = array<i64: 2, 128>}]} {
    %c0 = arith.constant 0 : index
    %c0_0 = arith.constant 0 : index
    %0 = vector.load %arg2[%c0, %c0_0] : memref<2x256xf32, #tpu.memory_space<vmem>>, vector<2x256xf32>
    %c0_1 = arith.constant 0 : index
    %c0_2 = arith.constant 0 : index
    %1 = vector.load %arg3[%c0_1, %c0_2] : memref<256x128xf32, #tpu.memory_space<vmem>>, vector<256x128xf32>
    %cst = arith.constant dense<0.000000e+00> : vector<2x128xf32>
    %2 = tpu.matmul %0, %1, %cst {dimension_numbers = #tpu.dot_dimension_numbers<[1], [0], [0], [1], [0, 0, 1, 1], [], []>} : vector<2x256xf32>, vector<256x128xf32>, vector<2x128xf32> -> vector<2x128xf32>
    %c0_3 = arith.constant 0 : index
    %c0_4 = arith.constant 0 : index
    %3 = vector.load %arg4[%c0_3, %c0_4] : memref<1x128xf32, #tpu.memory_space<vmem>>, vector<1x128xf32>
    %4 = vector.broadcast %3 : vector<1x128xf32> to vector<2x128xf32>
    %5 = arith.addf %2, %4 : vector<2x128xf32>
    %c0_5 = arith.constant 0 : index
    %c0_6 = arith.constant 0 : index
    %6 = vector.load %arg6[%c0_5, %c0_6] : memref<2x128xf32, #tpu.memory_space<vmem>>, vector<2x128xf32>
    tpu.vector_store %arg6[%c0_5, %c0_6], %5 {strides = array<i32>} : memref<2x128xf32, #tpu.memory_space<vmem>>, vector<2x128xf32>,
    %c0_7 = arith.constant 0 : index
    %c0_8 = arith.constant 0 : index
    %7 = vector.load %arg5[%c0_7, %c0_8] : memref<2x128xf32, #tpu.memory_space<vmem>>, vector<2x128xf32>
    %8 = arith.addf %5, %7 : vector<2x128xf32>
    %c0_9 = arith.constant 0 : index
    %c0_10 = arith.constant 0 : index
    %9 = vector.load %arg7[%c0_9, %c0_10] : memref<2x128xf32, #tpu.memory_space<vmem>>, vector<2x128xf32>
    tpu.vector_store %arg7[%c0_9, %c0_10], %8 {strides = array<i32>} : memref<2x128xf32, #tpu.memory_space<vmem>>, vector<2x128xf32>,
    return
  }
  func.func @transform_0(%arg0: i32, %arg1: i32) -> (i32, i32) {
    %c0_i32 = arith.constant 0 : i32
    return %arg0, %arg1 : i32, i32
  }
  func.func @transform_1(%arg0: i32, %arg1: i32) -> (i32, i32) {
    %c0_i32 = arith.constant 0 : i32
    %c0_i32_0 = arith.constant 0 : i32
    %c0_i32_1 = arith.constant 0 : i32
    return %c0_i32, %c0_i32_0 : i32, i32
  }
  func.func @transform_2(%arg0: i32, %arg1: i32) -> (i32, i32) {
    %c0_i32 = arith.constant 0 : i32
    %c0_i32_0 = arith.constant 0 : i32
    %c0_i32_1 = arith.constant 0 : i32
    return %c0_i32, %c0_i32_0 : i32, i32
  }
  func.func @transform_3(%arg0: i32, %arg1: i32) -> (i32, i32) {
    %c0_i32 = arith.constant 0 : i32
    return %arg0, %arg1 : i32, i32
  }
  func.func @transform_4(%arg0: i32, %arg1: i32) -> (i32, i32) {
    %c0_i32 = arith.constant 0 : i32
    return %arg0, %arg1 : i32, i32
  }
  func.func @transform_5(%arg0: i32, %arg1: i32) -> (i32, i32) {
    %c0_i32 = arith.constant 0 : i32
    return %arg0, %arg1 : i32, i32
  }
}

</mosaic_0001>

<llo_original>
// kernel: tile.8
$region0: #{tile.8}
  #allocation0 [shape = 's32[1]{0}', space=sflag, size = 0x4, scoped, tag = 'scoped memory for tile.8']
  %s0 = inlined_call_operand.vmem [shape: f32[16], index: 0, kind: input, shape index: {}]
  %s1 = inlined_call_operand.vmem [shape: f32[8,16], index: 1, kind: output, shape index: {}]
  // Predicated region
  $region2: #{tile.8} parent=0 // pred_check
    _
  $region3: #{tile.8} parent=0 // pred_check_branch
    %3 = sbr.rel (0) target = $region5
  $region4: #{tile.8} parent=0 // pred_region
    _
  $region5: #{tile.8} parent=0 // pred_fallthru
    _
  %v4 = vld [vmem:[%s0] ss:$0 sm:$0xff]
  %5 = vst [vmem:[%s1] sm:$0xff] %v4

// kernel: tile.9
$region0: #{tile.9}
  %s0 = inlined_call_operand.vmem [shape: f32[8,16], index: 0, kind: input, shape index: {}]
  %s1 = inlined_call_operand.vmem [shape: f32[1,128], index: 1, kind: output, shape index: {}]
  $region1: #{tile.9} parent=0
    #allocation0 [shape = 'u8[4096]{0}', space=vmem, size = 0x1000, scoped, tag = 'scoped mem for output reshape']
    %v2 = vld [vmem:[%s0] sm:$0x1]
    %vm3 = vcmask 130048
    %4 = vst.msk [vmem:[#allocation0] sm:$0x1] %vm3, %v2
    %s5 = scalar_lea.vmem %s0, 7
    %v6 = vld [vmem:[%s5] sm:$0x1]
    %7 = vrot.lane.b32.xlu0 %v6, 112
    %v8 = vpop.permute.xlu0 %7
    %vm9 = vcmask 1048448
    %10 = vst.msk [vmem:[#allocation0] sm:$0x1] %vm9, %v8
    %s11 = scalar_lea.vmem %s0, 6
    %v12 = vld [vmem:[%s11] sm:$0x1]
    %13 = vrot.lane.b32.xlu0 %v12, 96
    %v14 = vpop.permute.xlu0 %13
    %vm15 = vcmask 917248
    %16 = vst.msk [vmem:[#allocation0] sm:$0x1] %vm15, %v14
    %s17 = scalar_lea.vmem %s0, 5
    %v18 = vld [vmem:[%s17] sm:$0x1]
    %19 = vrot.lane.b32.xlu0 %v18, 80
    %v20 = vpop.permute.xlu0 %19
    %vm21 = vcmask 786048
    %22 = vst.msk [vmem:[#allocation0] sm:$0x1] %vm21, %v20
    %s23 = scalar_lea.vmem %s0, 4
    %v24 = vld [vmem:[%s23] sm:$0x1]
    %25 = vrot.lane.b32.xlu0 %v24, 64
    %v26 = vpop.permute.xlu0 %25
    %vm27 = vcmask 654848
    %28 = vst.msk [vmem:[#allocation0] sm:$0x1] %vm27, %v26
    %s29 = scalar_lea.vmem %s0, 3
    %v30 = vld [vmem:[%s29] sm:$0x1]
    %31 = vrot.lane.b32.xlu0 %v30, 48
    %v32 = vpop.permute.xlu0 %31
    %vm33 = vcmask 523648
    %34 = vst.msk [vmem:[#allocation0] sm:$0x1] %vm33, %v32
    %s35 = scalar_lea.vmem %s0, 2
    %v36 = vld [vmem:[%s35] sm:$0x1]
    %37 = vrot.lane.b32.xlu0 %v36, 32
    %v38 = vpop.permute.xlu0 %37
    %vm39 = vcmask 392448
    %40 = vst.msk [vmem:[#allocation0] sm:$0x1] %vm39, %v38
    %s41 = scalar_lea.vmem %s0, 1
    %v42 = vld [vmem:[%s41] sm:$0x1]
    %43 = vrot.lane.b32.xlu0 %v42, 16
    %v44 = vpop.permute.xlu0 %43
    %vm45 = vcmask 261248
    %46 = vst.msk [vmem:[#allocation0] sm:$0x1] %vm45, %v44
    %s48 = ssub.s32 2, 1
    %v49 = vld [vmem:[#allocation0] sm:%s48]
    %s51 = ssub.s32 2, 1
    %52 = vst [vmem:[%s1] sm:%s51] %v49

// kernel: one_value_per_node_rule_transform.1
$region0: #{one_value_per_node_rule_transform.1}
  #allocation0 [shape = 'u32[]', space=smem, size = 0x4, offset = 0x4, fixed_abs, tag = 'smem constant byte address 0x4 - core index']
  #allocation1 [shape = 'u32[72,128]{1,0:T(1,128)}', space=vmem, size = 0x9000, scoped, tag = 'internal scratch']
  %s0 = inlined_call_operand.vmem [shape: f32[2,256], index: 0, kind: input, shape index: {}]
  %s1 = inlined_call_operand.vmem [shape: f32[256,128], index: 1, kind: input, shape index: {}]
  %s2 = inlined_call_operand.vmem [shape: f32[1,128], index: 2, kind: input, shape index: {}]
  %s3 = inlined_call_operand.vmem [shape: f32[2,128], index: 3, kind: input, shape index: {}]
  %s4 = inlined_call_operand.vmem [shape: f32[2,128], index: 4, kind: output, shape index: {0}]
  %s5 = inlined_call_operand.hbm [shape: f32[2,128], index: 5, kind: output, shape index: {1}]
  %6 = xla_tuple %s4, %s5
  %s7 = sld [smem:[#allocation0]]
  $region34: #{one_value_per_node_rule_transform.1} parent=0
    _
  %s9 = ssub.s32 1, %s7
  %s10 = scalar_select 0, %s9, %s7
  $region1: #{one_value_per_node_rule_transform.1} parent=0
    #allocation2 [shape = 'u8[1024]{0}', space=vmem, size = 0x400, scoped, tag = 'output window, operand 1, single buffered']
    #allocation3 [shape = 's32[1]{0}', space=sflag, size = 0x4, scoped, tag = 'scoped memory for one_value_per_node_rule_transform.1']
    %11 = vsyncpa [#allocation3], 0
    // Predicated region
    $region2: #{one_value_per_node_rule_transform.1} parent=1 // pred_check
      _
    $region3: #{one_value_per_node_rule_transform.1} parent=1 // pred_check_branch
      %13 = sbr.rel (0) target = $region5
    $region4: #{one_value_per_node_rule_transform.1} parent=1 // pred_region
      _
    $region5: #{one_value_per_node_rule_transform.1} parent=1 // pred_fallthru
      _
    // Predicated region
    $region6: #{one_value_per_node_rule_transform.1} parent=1 // pred_check
      _
    $region7: #{one_value_per_node_rule_transform.1} parent=1 // pred_check_branch
      %15 = sbr.rel (0) target = $region9
    $region8: #{one_value_per_node_rule_transform.1} parent=1 // pred_region
      _
    $region9: #{one_value_per_node_rule_transform.1} parent=1 // pred_fallthru
      _
    // Predicated region
    $region10: #{one_value_per_node_rule_transform.1} parent=1 // pred_check
      _
    $region11: #{one_value_per_node_rule_transform.1} parent=1 // pred_check_branch
      %17 = sbr.rel (0) target = $region13
    $region12: #{one_value_per_node_rule_transform.1} parent=1 // pred_region
      _
    $region13: #{one_value_per_node_rule_transform.1} parent=1 // pred_fallthru
      _
    // Predicated region
    $region14: #{one_value_per_node_rule_transform.1} parent=1 // pred_check
      _
    $region15: #{one_value_per_node_rule_transform.1} parent=1 // pred_check_branch
      %19 = sbr.rel (0) target = $region17
    $region16: #{one_value_per_node_rule_transform.1} parent=1 // pred_region
      _
    $region17: #{one_value_per_node_rule_transform.1} parent=1 // pred_fallthru
      _
    %v20 = vld [vmem:[%s0] sm:$0xf]
    %v21 = vld [vmem:[%s1] sm:$0xff]
    %v22 = vld [vmem:[%s1 + $0x8] sm:$0xff]
    %v23 = vld [vmem:[%s1 + $0x10] sm:$0xff]
    %v24 = vld [vmem:[%s1 + $0x18] sm:$0xff]
    %v25 = vld [vmem:[%s1 + $0x20] sm:$0xff]
    %v26 = vld [vmem:[%s1 + $0x28] sm:$0xff]
    %v27 = vld [vmem:[%s1 + $0x30] sm:$0xff]
    %v28 = vld [vmem:[%s1 + $0x38] sm:$0xff]
    %v29 = vld [vmem:[%s1 + $0x40] sm:$0xff]
    %v30 = vld [vmem:[%s1 + $0x48] sm:$0xff]
    %v31 = vld [vmem:[%s1 + $0x50] sm:$0xff]
    %v32 = vld [vmem:[%s1 + $0x58] sm:$0xff]
    %v33 = vld [vmem:[%s1 + $0x60] sm:$0xff]
    %v34 = vld [vmem:[%s1 + $0x68] sm:$0xff]
    %v35 = vld [vmem:[%s1 + $0x70] sm:$0xff]
    %v36 = vld [vmem:[%s1 + $0x78] sm:$0xff]
    %v37 = vld [vmem:[%s1 + $0x80] sm:$0xff]
    %v38 = vld [vmem:[%s1 + $0x88] sm:$0xff]
    %v39 = vld [vmem:[%s1 + $0x90] sm:$0xff]
    %v40 = vld [vmem:[%s1 + $0x98] sm:$0xff]
    %v41 = vld [vmem:[%s1 + $0xa0] sm:$0xff]
    %v42 = vld [vmem:[%s1 + $0xa8] sm:$0xff]
    %v43 = vld [vmem:[%s1 + $0xb0] sm:$0xff]
    %v44 = vld [vmem:[%s1 + $0xb8] sm:$0xff]
    %v45 = vld [vmem:[%s1 + $0xc0] sm:$0xff]
    %v46 = vld [vmem:[%s1 + $0xc8] sm:$0xff]
    %v47 = vld [vmem:[%s1 + $0xd0] sm:$0xff]
    %v48 = vld [vmem:[%s1 + $0xd8] sm:$0xff]
    %v49 = vld [vmem:[%s1 + $0xe0] sm:$0xff]
    %v50 = vld [vmem:[%s1 + $0xe8] sm:$0xff]
    %v51 = vld [vmem:[%s1 + $0xf0] sm:$0xff]
    %v52 = vld [vmem:[%s1 + $0xf8] sm:$0xff]
    %v53 = vld [vmem:[%s2] sm:$0x1]
    %v55 = vperm.slane %v53, 0
    %58 = vst [vmem:[#allocation1] ss:$4 sm:$0xff] %v20
    %v59 = vld.sshfl [vmem:[#allocation1] sm:$0xff pattern:$0x73625140]
    %v60 = vld.sshfl [vmem:[#allocation1 + $0x8] sm:$0xff pattern:$0x73625140]
    %63 = vmatpush.msra.mxu0 %v36
    %64 = vmatpush.msra.mxu0 %v35
    %65 = vmatpush.msra.mxu0 %v34
    %66 = vmatpush.msra.mxu0 %v33
    %67 = vmatpush.msra.mxu0 %v32
    %68 = vmatpush.msra.mxu0 %v31
    %69 = vmatpush.msra.mxu0 %v30
    %70 = vmatpush.msra.mxu0 %v29
    %71 = vmatpush.msra.mxu0 %v28
    %72 = vmatpush.msra.mxu0 %v27
    %73 = vmatpush.msra.mxu0 %v26
    %74 = vmatpush.msra.mxu0 %v25
    %75 = vmatpush.msra.mxu0 %v24
    %76 = vmatpush.msra.mxu0 %v23
    %77 = vmatpush.msra.mxu0 %v22
    %78 = vmatpush.msra.mxu0 %v21
    %79 = vmatmul.f32.gmra.mxu0 %v59
    %v80 = vpop.f32.mrf.mxu0
    %v81 = vadd.f32 %v55, %v80
    %82 = vdwg.mxu0
    %83 = vmatpush.msra.mxu0 %v52
    %84 = vmatpush.msra.mxu0 %v51
    %85 = vmatpush.msra.mxu0 %v50
    %86 = vmatpush.msra.mxu0 %v49
    %87 = vmatpush.msra.mxu0 %v48
    %88 = vmatpush.msra.mxu0 %v47
    %89 = vmatpush.msra.mxu0 %v46
    %90 = vmatpush.msra.mxu0 %v45
    %91 = vmatpush.msra.mxu0 %v44
    %92 = vmatpush.msra.mxu0 %v43
    %93 = vmatpush.msra.mxu0 %v42
    %94 = vmatpush.msra.mxu0 %v41
    %95 = vmatpush.msra.mxu0 %v40
    %96 = vmatpush.msra.mxu0 %v39
    %97 = vmatpush.msra.mxu0 %v38
    %98 = vmatpush.msra.mxu0 %v37
    %99 = vmatmul.f32.gmra.mxu0 %v60
    %v100 = vpop.f32.mrf.mxu0
    %v101 = vadd.f32 %v81, %v100
    %102 = vdwg.mxu0
    %103 = vst [vmem:[%s4] sm:$0x3] %v101
    %v104 = vld [vmem:[%s3] sm:$0x3]
    %v105 = vadd.f32 %v101, %v104
    %106 = vst [vmem:[#allocation2] sm:$0x3] %v105
    // Predicated region
    $region18: #{one_value_per_node_rule_transform.1} parent=1 // pred_check
      _
    $region19: #{one_value_per_node_rule_transform.1} parent=1 // pred_check_branch
      %108 = sbr.rel (0) target = $region21
    $region20: #{one_value_per_node_rule_transform.1} parent=1 // pred_region
      _
    $region21: #{one_value_per_node_rule_transform.1} parent=1 // pred_fallthru
      _
    // Predicated region
    $region22: #{one_value_per_node_rule_transform.1} parent=1 // pred_check
      _
    $region23: #{one_value_per_node_rule_transform.1} parent=1 // pred_check_branch
      %110 = sbr.rel (0) target = $region25
    $region24: #{one_value_per_node_rule_transform.1} parent=1 // pred_region
      %112 = vsyncadd [#allocation3], 0
      %s114 = sshll.u32 [#allocation2], 4
      %s115 = int_to_ptr.vmem [resolvable:$true] %s114
      %s116 = sshll.u32 %s5, 4
      %s117 = int_to_ptr.hbm [resolvable:$true] %s116
      %119 = dma.vmem_to_hbm [thread:$0]  %s115, 32, %s117, [#allocation3]
    $region25: #{one_value_per_node_rule_transform.1} parent=1 // pred_fallthru
      _
    // Predicated region
    $region26: #{one_value_per_node_rule_transform.1} parent=1 // pred_check
      _
    $region27: #{one_value_per_node_rule_transform.1} parent=1 // pred_check_branch
      %121 = sbr.rel (0) target = $region29
    $region28: #{one_value_per_node_rule_transform.1} parent=1 // pred_region
      _
    $region29: #{one_value_per_node_rule_transform.1} parent=1 // pred_fallthru
      _
    // Predicated region
    $region30: #{one_value_per_node_rule_transform.1} parent=1 // pred_check
      _
    $region31: #{one_value_per_node_rule_transform.1} parent=1 // pred_check_branch
      %123 = sbr.rel (0) target = $region33
    $region32: #{one_value_per_node_rule_transform.1} parent=1 // pred_region
      %125 = dma.done [#allocation3], 32
    $region33: #{one_value_per_node_rule_transform.1} parent=1 // pred_fallthru
      _
    %126 = vsyncpa [#allocation3], 1

</llo_original>
